<compile_context>
chip_gen: v5e
topology: v5e:2x2
jax: 0.10.0
libtpu: 0.0.40
codegen_flags: <defaults>
</compile_context>

<pallas_src>
import math

import jax
import jax.numpy as jnp
from jax.experimental import pallas as pl
from jax.experimental.pallas import tpu as pltpu


def _round_up(x, m):
    return (x + m - 1) // m * m


def _vmem_capacity_bytes():
    cap = 64 * 1024 * 1024  # conservative default (v7x per-core VMEM)
    try:
        info = pltpu.get_tpu_info()
        cap = int(getattr(info, "vmem_capacity_bytes", cap)) or cap
    except Exception:
        pass
    return min(cap, 128 * 1024 * 1024)


# ----------------------------- Pallas kernel -------------------------------
def _stft_kernel(basis_ref, frames_ref, out_ref):
    # basis_ref  : (TB, n_fft)     bf16, windowed interleaved [cos_k; -sin_k] rows
    # frames_ref : (1, n_fft, TF)  bf16 frames: time on sublanes, frame idx on lanes
    # out_ref    : (1, TB, TF)     f32 spectrogram tile, (interleaved bins, frames)
    out_ref[0] = jnp.dot(basis_ref[...], frames_ref[0],
                         preferred_element_type=jnp.float32)


def _stft_pallas(basis, frames_t, tb, tf, vmem_needed, vmem_cap):
    """basis: (rows_pad, n_fft) bf16, frames_t: (bc, n_fft, f_pad) bf16."""
    rows_pad, n_fft = basis.shape
    bc, _, f_pad = frames_t.shape
    assert rows_pad % tb == 0 and f_pad % tf == 0
    nt = rows_pad // tb
    f_tiles = f_pad // tf

    # bin-tile axis outermost: basis tile index constant across all inner
    # steps -> basis DMA'd nt times total, frames streamed nt times.
    grid = (nt, f_tiles, bc)

    in_b = basis.dtype.itemsize
    cost = pl.CostEstimate(
        flops=2 * rows_pad * n_fft * f_pad * bc,
        transcendentals=0,
        bytes_accessed=(rows_pad * n_fft * in_b               # basis, once
                        + nt * bc * n_fft * f_pad * in_b      # frames, nt times
                        + bc * rows_pad * f_pad * 4),         # output, once
    )

    vmem_limit = min(int(vmem_cap * 0.9), int(vmem_needed) + (16 << 20))
    vmem_limit = max(vmem_limit, 32 << 20)

    grid_spec = pltpu.PrefetchScalarGridSpec(
        num_scalar_prefetch=0,
        grid=grid,
        in_specs=[
            pl.BlockSpec((tb, n_fft), lambda jb, jf, b: (jb, 0)),
            pl.BlockSpec((1, n_fft, tf), lambda jb, jf, b: (b, 0, jf)),
        ],
        out_specs=pl.BlockSpec((1, tb, tf), lambda jb, jf, b: (b, jb, jf)),
    )
    return pl.pallas_call(
        _stft_kernel,
        grid_spec=grid_spec,
        out_shape=jax.ShapeDtypeStruct((bc, rows_pad, f_pad), jnp.float32),
        compiler_params=pltpu.CompilerParams(
            dimension_semantics=("parallel", "parallel", "parallel"),
            vmem_limit_bytes=int(vmem_limit)),
        cost_estimate=cost,
    )(basis, frames_t)


# ------------------------------- Module ------------------------------------
class STFT:
    """JAX/Pallas port of the PyTorch STFT module (center=False, onesided)."""

    def __init__(self, n_fft=4096, n_hop=1024, center=False,
                 compute_dtype=jnp.bfloat16):
        assert not center, "center=True (reflect pad) not implemented"  # TODO(synk): reflect padding path
        self.n_fft = n_fft
        self.n_hop = n_hop
        self.n_bins = n_fft // 2 + 1
        self.compute_dtype = compute_dtype
        self.tf = 256                                  # frame (lane) tile

        in_b = jnp.dtype(compute_dtype).itemsize
        out_b = 4
        self.vmem_cap = _vmem_capacity_bytes()
        budget = (self.vmem_cap * 7) // 10             # headroom for scratch/metadata

        # Interleaved rows: row 2k = cos_k, row 2k+1 = -sin_k (real/imag adjacent).
        rows_exact = 2 * self.n_bins
        nt = tb = None
        for cand_nt in range(1, 4096):
            cand_tb = _round_up(-(-rows_exact // cand_nt), 8)
            need = 2 * (cand_tb * n_fft * in_b         # basis (double-buffered alloc)
                        + n_fft * self.tf * in_b       # frames tile
                        + cand_tb * self.tf * out_b)   # output tile
            if need <= budget:
                nt, tb = cand_nt, cand_tb
                self._vmem_needed = need
                break
        if nt is None:
            raise ValueError("n_fft too large for VMEM tiling")
        self.nt, self.tb = nt, tb
        self.rows_pad = nt * tb

        # Windowed, fused DFT basis.  Exact mod-N reduction of n*k keeps the
        # f32 angle accurate for large n_fft (int32 max ~8.4e6, no overflow).
        n = jnp.arange(n_fft, dtype=jnp.int32)
        k = jnp.arange(self.n_bins, dtype=jnp.int32)
        nk_mod = (k[:, None] * n[None, :]) % n_fft                   # (n_bins, n_fft)
        ang = (2.0 * math.pi / n_fft) * nk_mod.astype(jnp.float32)
        window = 0.5 * (1.0 - jnp.cos(
            2.0 * math.pi * n.astype(jnp.float32) / n_fft))          # periodic hann
        cos_b = jnp.cos(ang) * window[None, :]
        sin_b = -jnp.sin(ang) * window[None, :]
        inter = jnp.stack([cos_b, sin_b], axis=1).reshape(rows_exact, n_fft)
        basis = jnp.pad(inter, ((0, self.rows_pad - rows_exact), (0, 0)))
        self.basis = basis.astype(compute_dtype)

    def __call__(self, x):
        """x: (nb_samples, nb_channels, nb_timesteps)
           -> (nb_samples, nb_channels, n_bins, nb_frames, 2)"""
        nb_samples, nb_channels, nb_timesteps = x.shape
        if nb_timesteps < self.n_fft:
            raise ValueError("nb_timesteps must be >= n_fft (center=False)")
        nb_frames = (nb_timesteps - self.n_fft) // self.n_hop + 1
        f_pad = _round_up(nb_frames, self.tf)          # lane-aligned frames
        bc = nb_samples * nb_channels

        xf = x.reshape(bc, nb_timesteps).astype(self.compute_dtype)

        # Zero-pad so the lane-aligned padded frame count frames in-bounds.
        need = self.n_hop * (f_pad - 1) + self.n_fft
        if need > nb_timesteps:
            xf = jnp.pad(xf, ((0, 0), (0, need - nb_timesteps)))

        if self.n_fft % self.n_hop == 0:
            # Frame extraction via n_fft/n_hop shifted strided views of
            # hop-blocks (plain copies, no XLA gather), already transposed to
            # (n_fft, frames) so the kernel emits the final layout directly.
            r_count = self.n_fft // self.n_hop
            n_blocks = need // self.n_hop
            xb = jnp.swapaxes(
                xf[:, :n_blocks * self.n_hop].reshape(bc, n_blocks, self.n_hop),
                1, 2)                                                # (bc, hop, n_blocks)
            frames_t = jnp.concatenate(
                [xb[:, :, r:r + f_pad] for r in range(r_count)], axis=1)
        else:
            # TODO(synk): stream frames straight from the raw signal with
            # manual DMA (memory_space=pl.ANY) to avoid this gather.
            idx_t = (jnp.arange(self.n_fft)[:, None]
                     + self.n_hop * jnp.arange(f_pad)[None, :])      # (n_fft, f_pad)
            frames_t = xf[:, idx_t]                                  # (bc, n_fft, f_pad)

        out = _stft_pallas(self.basis, frames_t, self.tb, self.tf,
                           self._vmem_needed, self.vmem_cap)         # (bc, rows_pad, f_pad)

        # Epilogue: real/imag are adjacent rows -> one reshape + swapaxes
        # (single fused XLA copy), no separate slice+stack passes.
        spec = out[:, :2 * self.n_bins, :nb_frames]
        spec = spec.reshape(nb_samples, nb_channels, self.n_bins, 2, nb_frames)
        return jnp.swapaxes(spec, -1, -2)              # (B, C, bins, frames, 2)


# ------------------------------- Driver -------------------------------------
if __name__ == "__main__":
    key = jax.random.PRNGKey(0)
    B, C, T = 2, 2, 256
    n_fft, n_hop = 64, 16

    x = jax.random.normal(key, (B, C, T), dtype=jnp.float32)

    stft = STFT(n_fft=n_fft, n_hop=n_hop, center=False)
    out = jax.block_until_ready(stft(x))

    nb_frames = (T - n_fft) // n_hop + 1
    n_bins = n_fft // 2 + 1
    assert out.shape == (B, C, n_bins, nb_frames, 2), out.shape

    # Reference: pure-JAX rfft on windowed frames.
    window = 0.5 * (1.0 - jnp.cos(
        2.0 * math.pi * jnp.arange(n_fft, dtype=jnp.float32) / n_fft))
    idx = n_hop * jnp.arange(nb_frames)[:, None] + jnp.arange(n_fft)[None, :]
    frames_ref = x.reshape(B * C, T)[:, idx] * window[None, None, :]
    spec = jnp.fft.rfft(frames_ref, axis=-1)                 # (BC, frames, bins)
    ref = jnp.stack([spec.real, spec.imag], axis=-1)
    ref = ref.reshape(B, C, nb_frames, n_bins, 2)
    ref = jnp.transpose(ref, (0, 1, 3, 2, 4))                # (B, C, bins, frames, 2)

    err = float(jnp.max(jnp.abs(out - ref)))
    # bf16 basis/frames with f32 accumulation: allow ~2% of the spectral peak.
    tol = 2e-2 * max(1.0, float(jnp.max(jnp.abs(ref))))
    assert err < tol, (err, tol)

    print("KERNEL_OK")
</pallas_src>

<mosaic_0001>
module attributes {stable_mosaic.version = 11 : i64} {
  func.func @_stft_kernel(%arg0: i32, %arg1: i32, %arg2: i32, %arg3: memref<72x64xbf16, #tpu.memory_space<vmem>>, %arg4: memref<1x64x256xbf16, #tpu.memory_space<vmem>>, %arg5: memref<1x72x256xf32, #tpu.memory_space<vmem>>) attributes {dimension_semantics = [#tpu.dimension_semantics<parallel>, #tpu.dimension_semantics<parallel>, #tpu.dimension_semantics<parallel>], iteration_bounds = array<i64: 1, 1, 4>, scalar_prefetch = 0 : i64, scratch_operands = 0 : i64, tpu.core_type = #tpu.core_type<tc>, window_params = [{transform_indices = @transform_0, window_bounds = array<i64: 72, 64>}, {transform_indices = @transform_1, window_bounds = array<i64: 1, 64, 256>}, {transform_indices = @transform_2, window_bounds = array<i64: 1, 72, 256>}]} {
    %c0 = arith.constant 0 : index
    %c0_0 = arith.constant 0 : index
    %0 = vector.load %arg3[%c0, %c0_0] : memref<72x64xbf16, #tpu.memory_space<vmem>>, vector<72x64xbf16>
    %c0_1 = arith.constant 0 : index
    %c0_2 = arith.constant 0 : index
    %c0_3 = arith.constant 0 : index
    %1 = vector.load %arg4[%c0_1, %c0_2, %c0_3] : memref<1x64x256xbf16, #tpu.memory_space<vmem>>, vector<1x64x256xbf16>
    %2 = vector.shape_cast %1 : vector<1x64x256xbf16> to vector<64x256xbf16>
    %cst = arith.constant dense<0.000000e+00> : vector<72x256xf32>
    %3 = tpu.matmul %0, %2, %cst {dimension_numbers = #tpu.dot_dimension_numbers<[1], [0], [0], [1], [0, 0, 1, 1], [], []>} : vector<72x64xbf16>, vector<64x256xbf16>, vector<72x256xf32> -> vector<72x256xf32>
    %c0_4 = arith.constant 0 : index
    %c0_5 = arith.constant 0 : index
    %c0_6 = arith.constant 0 : index
    %4 = vector.load %arg5[%c0_4, %c0_5, %c0_6] : memref<1x72x256xf32, #tpu.memory_space<vmem>>, vector<1x72x256xf32>
    %5 = vector.shape_cast %4 : vector<1x72x256xf32> to vector<72x256xf32>
    %6 = vector.shape_cast %3 : vector<72x256xf32> to vector<1x72x256xf32>
    tpu.vector_store %arg5[%c0_4, %c0_5, %c0_6], %6 {strides = array<i32>} : memref<1x72x256xf32, #tpu.memory_space<vmem>>, vector<1x72x256xf32>,
    return
  }
  func.func @transform_0(%arg0: i32, %arg1: i32, %arg2: i32) -> (i32, i32) {
    %c0_i32 = arith.constant 0 : i32
    %c0_i32_0 = arith.constant 0 : i32
    return %arg0, %c0_i32 : i32, i32
  }
  func.func @transform_1(%arg0: i32, %arg1: i32, %arg2: i32) -> (i32, i32, i32) {
    %c0_i32 = arith.constant 0 : i32
    %c0_i32_0 = arith.constant 0 : i32
    return %arg2, %c0_i32, %arg1 : i32, i32, i32
  }
  func.func @transform_2(%arg0: i32, %arg1: i32, %arg2: i32) -> (i32, i32, i32) {
    %c0_i32 = arith.constant 0 : i32
    return %arg2, %arg0, %arg1 : i32, i32, i32
  }
}

</mosaic_0001>

<llo_original>
// kernel: tpu_custom_call.1
$region0: #{tpu_custom_call.1}
  #allocation0 [shape = 'u32[]', space=smem, size = 0x4, offset = 0x4, fixed_abs, tag = 'smem constant byte address 0x4 - core index']
  #allocation1 [shape = 'u32[72,128]{1,0:T(1,128)}', space=vmem, size = 0x9000, scoped, tag = 'internal scratch']
  %s0 = inlined_call_operand.vmem [shape: bf16[72,64], index: 0, kind: input, shape index: {}]
  %s1 = inlined_call_operand.hbm [shape: bf16[4,64,256], index: 1, kind: input, shape index: {}]
  %s2 = inlined_call_operand.hbm [shape: f32[4,72,256], index: 2, kind: output, shape index: {}]
  %s3 = sld [smem:[#allocation0]]
  $region45: #{tpu_custom_call.1} parent=0
    _
  %s5 = ssub.s32 1, %s3
  %s6 = scalar_select 0, %s5, %s3
  $region1: #{tpu_custom_call.1} parent=0
    #allocation2 [shape = 'u8[65536]{0}', space=vmem, size = 0x10000, scoped, tag = 'input window, operand 1']
    #allocation3 [shape = 's32[2]{0}', space=sflag, size = 0x8, scoped, tag = 'scoped memory for tpu_custom_call.1']
    #allocation4 [shape = 's32[2]{0}', space=sflag, size = 0x8, scoped, tag = 'scoped memory for tpu_custom_call.1']
    #allocation5 [shape = 'u8[147456]{0}', space=vmem, size = 0x24000, scoped, tag = 'output window, operand 0']
    %7 = vsyncpa [#allocation3], 0
    %s8 = scalar_lea.sflag [#allocation3], 1
    %9 = vsyncpa %s8, 0
    %10 = vsyncpa [#allocation4], 0
    %s11 = scalar_lea.sflag [#allocation4], 1
    %12 = vsyncpa %s11, 0
    loop: start=0, step=1, limit=6
    $region2: #{tpu_custom_call.1} parent=1 // loop_pre_header
      _
    $region3: #{tpu_custom_call.1} parent=1 // loop_header
      %s14 = sphi 0, %s18
      %p15 = scmp.ge.s32.totalorder %s14, 6
      %s21 = sphi 0, %s40
      %s22 = sphi 0, %s36
      %s23 = sphi 0, %s32
      %s24 = sphi 0, %s21
      %s25 = sphi 0, %s22
      %s26 = sphi 0, %s23
      %s27 = sphi 0, %s24
      %s28 = sphi 0, %s25
      %s29 = sphi 0, %s26
      %s43 = sphi 0, %s45
      %s46 = sphi 0, %s43
      %s47 = sphi 0, %s46
      %s63 = sphi 0, %s47
      %s71 = sphi 0, %s73
      %s74 = sphi 0, %s71
      %s75 = sphi 0, %s74
      %s91 = sphi 0, %s75
      %s101 = sphi 0, %s103
      %s104 = sphi 0, %s101
      %s105 = sphi 0, %s104
      %s121 = sphi 0, %s105
    $region4: #{tpu_custom_call.1} parent=1 // loop_header_branch
      %17 = sbr.rel (%p15) target = $region8
    $region5: #{tpu_custom_call.1} parent=1 // loop_body
      %s19 = ssub.s32 %s14, 1
      %s20 = ssub.s32 %s14, 2
      %s30 = sadd.s32 1, %s23
      %p31 = scmp.ge.s32.totalorder %s30, 4
      %s32 = scalar_select %p31, 0, %s30
      %s33 = sadd.s32 1, %s22
      %s34 = scalar_select %p31, %s33, %s22
      %p35 = scmp.ge.s32.totalorder %s34, 1
      %s36 = scalar_select %p35, 0, %s34
      %s37 = sadd.s32 1, %s21
      %s38 = scalar_select %p35, %s37, %s21
      %p39 = scmp.ge.s32.totalorder %s38, 1
      %s40 = scalar_select %p39, 0, %s38
      %s41 = ssub.s32 %s21, %s40
      %p42 = scmp.eq.s32.totalorder %s41, 0
      %s44 = sadd.s32 %s43, 1
      %s45 = scalar_select %p42, %s43, %s44
      %p48 = pneg %p42
      %p49 = scmp.eq.s32.totalorder %s14, 3
      %p50 = por %p48, %p49
      %p51 = scmp.ne.s32.totalorder %s43, %s46
      %p52 = scmp.eq.s32.totalorder %s14, 0
      %p53 = por %p51, %p52
      %p54 = scmp.ne.s32.totalorder %s43, %s46
      %p55 = scmp.eq.s32.totalorder %s19, 3
      %p56 = por %p54, %p55
      %p57 = scmp.ne.s32.totalorder %s46, %s47
      %p58 = scmp.eq.s32.totalorder %s19, 0
      %p59 = por %p57, %p58
      %p60 = scmp.ne.s32.totalorder %s46, %s47
      %p61 = scmp.eq.s32.totalorder %s20, 3
      %p62 = por %p60, %p61
      %p64 = scmp.ne.s32.totalorder %s47, %s63
      %p65 = scmp.eq.s32.totalorder %s20, 0
      %p66 = por %p64, %p65
      %s67 = ssub.s32 %s23, %s32
      %s68 = ssub.s32 %s22, %s36
      %s69 = sor.u32 %s67, %s68
      %p70 = scmp.eq.s32.totalorder %s69, 0
      %s72 = sadd.s32 %s71, 1
      %s73 = scalar_select %p70, %s71, %s72
      %p76 = pneg %p70
      %p77 = scmp.eq.s32.totalorder %s14, 3
      %p78 = por %p76, %p77
      %p79 = scmp.ne.s32.totalorder %s71, %s74
      %p80 = scmp.eq.s32.totalorder %s14, 0
      %p81 = por %p79, %p80
      %p82 = scmp.ne.s32.totalorder %s71, %s74
      %p83 = scmp.eq.s32.totalorder %s19, 3
      %p84 = por %p82, %p83
      %p85 = scmp.ne.s32.totalorder %s74, %s75
      %p86 = scmp.eq.s32.totalorder %s19, 0
      %p87 = por %p85, %p86
      %p88 = scmp.ne.s32.totalorder %s74, %s75
      %p89 = scmp.eq.s32.totalorder %s20, 3
      %p90 = por %p88, %p89
      %p92 = scmp.ne.s32.totalorder %s75, %s91
      %p93 = scmp.eq.s32.totalorder %s20, 0
      %p94 = por %p92, %p93
      %s95 = ssub.s32 %s23, %s32
      %s96 = ssub.s32 %s21, %s40
      %s97 = sor.u32 %s95, %s96
      %s98 = ssub.s32 %s22, %s36
      %s99 = sor.u32 %s97, %s98
      %p100 = scmp.eq.s32.totalorder %s99, 0
      %s102 = sadd.s32 %s101, 1
      %s103 = scalar_select %p100, %s101, %s102
      %p106 = pneg %p100
      %p107 = scmp.eq.s32.totalorder %s14, 3
      %p108 = por %p106, %p107
      %p109 = scmp.ne.s32.totalorder %s101, %s104
      %p110 = scmp.eq.s32.totalorder %s14, 0
      %p111 = por %p109, %p110
      %p112 = scmp.ne.s32.totalorder %s101, %s104
      %p113 = scmp.eq.s32.totalorder %s19, 3
      %p114 = por %p112, %p113
      %p115 = scmp.ne.s32.totalorder %s104, %s105
      %p116 = scmp.eq.s32.totalorder %s19, 0
      %p117 = por %p115, %p116
      %p118 = scmp.ne.s32.totalorder %s104, %s105
      %p119 = scmp.eq.s32.totalorder %s20, 3
      %p120 = por %p118, %p119
      %p122 = scmp.ne.s32.totalorder %s105, %s121
      %p123 = scmp.eq.s32.totalorder %s20, 0
      %p124 = por %p122, %p123
      %p125 = scmp.le.s32.totalorder 1, %s14
      %p126 = scmp.lt.s32.totalorder %s14, 5
      %p127 = pnand %p125, %p126
      %p128 = pneg %p127
      // Predicated region
      $region9: #{tpu_custom_call.1} parent=5 // pred_check
        _
      $region10: #{tpu_custom_call.1} parent=5 // pred_check_branch
        %130 = sbr.rel (%p127) target = $region12
      $region11: #{tpu_custom_call.1} parent=5 // pred_region
        %s131 = ssub.s32 %s14, 1
        // Predicated region
        $region13: #{tpu_custom_call.1} parent=11 // pred_check
          %p132 = pneg %p59
        $region14: #{tpu_custom_call.1} parent=11 // pred_check_branch
          %134 = sbr.rel (%p132) target = $region16
        $region15: #{tpu_custom_call.1} parent=11 // pred_region
          %s135 = smul.u32 9, %s24
          %p136 = scmp.lt.s32.totalorder %s135, 8
          %s137 = scalar_select %p136, %s135, 8
          %s138 = smul.addr %s137, 4
          %s139 = scalar_lea.vmem %s0, %s138
          %s140 = smul.u32 9, %s24
        $region16: #{tpu_custom_call.1} parent=11 // pred_fallthru
          _
      $region12: #{tpu_custom_call.1} parent=5 // pred_fallthru
        _
      %p141 = scmp.lt.s32.totalorder %s14, 4
      // Predicated region
      $region17: #{tpu_custom_call.1} parent=5 // pred_check
        %p142 = pneg %p141
      $region18: #{tpu_custom_call.1} parent=5 // pred_check_branch
        %144 = sbr.rel (%p142) target = $region20
      $region19: #{tpu_custom_call.1} parent=5 // pred_region
        // Predicated region
        $region21: #{tpu_custom_call.1} parent=19 // pred_check
          %p145 = pneg %p81
        $region22: #{tpu_custom_call.1} parent=19 // pred_check_branch
          %147 = sbr.rel (%p145) target = $region24
        $region23: #{tpu_custom_call.1} parent=19 // pred_region
          %s148 = sand.u32 %s71, 1
          %s149 = scalar_lea.sflag [#allocation3], %s148
          %s150 = sand.u32 %s71, 1
          %s151 = smul.addr %s150, 64
          %s152 = scalar_lea.vmem [#allocation2], %s151
          %s153 = smul.u32 2, %s22
          %155 = vsyncadd %s149, 0
          %s156 = smul.addr %s23, 16
          %s157 = sadd.s32 %s153, %s156
          %s158 = smul.addr %s157, 4
          %s159 = scalar_lea.hbm %s1, %s158
          %s160 = sshll.u32 %s159, 4
          %s161 = int_to_ptr.hbm [resolvable:$true] %s160
          %s162 = sshll.u32 %s152, 4
          %s163 = int_to_ptr.vmem [resolvable:$true] %s162
          %168 = dma.hbm_to_vmem [thread:$0]  %s161, 1024, %s163, %s149, 128, 128, 8
        $region24: #{tpu_custom_call.1} parent=19 // pred_fallthru
          _
      $region20: #{tpu_custom_call.1} parent=5 // pred_fallthru
        _
      %p169 = scmp.le.s32.totalorder 1, %s14
      %p170 = scmp.lt.s32.totalorder %s14, 5
      %p171 = pnand %p169, %p170
      %p172 = pneg %p171
      // Predicated region
      $region25: #{tpu_custom_call.1} parent=5 // pred_check
        _
      $region26: #{tpu_custom_call.1} parent=5 // pred_check_branch
        %174 = sbr.rel (%p171) target = $region28
      $region27: #{tpu_custom_call.1} parent=5 // pred_region
        %s175 = ssub.s32 %s14, 1
        %s176 = sand.u32 %s74, 1
        %s177 = scalar_lea.sflag [#allocation3], %s176
        %s178 = sand.u32 %s74, 1
        %s179 = smul.addr %s178, 64
        %s180 = scalar_lea.vmem [#allocation2], %s179
        // Predicated region
        $region29: #{tpu_custom_call.1} parent=27 // pred_check
          %p181 = pneg %p87
        $region30: #{tpu_custom_call.1} parent=27 // pred_check_branch
          %183 = sbr.rel (%p181) target = $region32
        $region31: #{tpu_custom_call.1} parent=27 // pred_region
          %185 = dma.done %s177, 1024
        $region32: #{tpu_custom_call.1} parent=27 // pred_fallthru
          _
        %s186 = smul.u32 9, %s24
        %p187 = scmp.lt.s32.totalorder %s186, 8
        %s188 = scalar_select %p187, %s186, 8
        %s189 = smul.addr %s188, 4
        %s190 = scalar_lea.vmem %s0, %s189
        %p191 = pneg %p59
        %p192 = pneg %p56
        %s193 = sand.u32 %s74, 1
        %s194 = scalar_lea.sflag [#allocation3], %s193
        %s195 = sand.u32 %s74, 1
        %s196 = smul.addr %s195, 64
        %s197 = scalar_lea.vmem [#allocation2], %s196
        %p198 = pneg %p87
        %p199 = pneg %p84
        %p200 = pneg %p117
        %p201 = pneg %p114
        %s202 = sand.u32 %s104, 1
        %s203 = scalar_lea.sflag [#allocation4], %s202
        %s204 = sand.u32 %s104, 1
        %s205 = smul.addr %s204, 144
        %s206 = scalar_lea.vmem [#allocation5], %s205
        %s207 = smul.u32 9, %s24
        %p208 = scmp.lt.s32.totalorder %s207, 8
        %s209 = scalar_select %p208, %s207, 8
        %s210 = smul.addr %s209, 4
        %s211 = scalar_lea.vmem %s0, %s210
        %s212 = smul.u32 9, %s24
        %s213 = smul.u32 2, %s25
        %s214 = smul.u32 9, %s24
        %s215 = smul.u32 2, %s25
        %v217 = vld [vmem:[%s211] sm:$0xf]
        %v218 = vld [vmem:[%s211 + $0x4] sm:$0xf]
        %v219 = vld [vmem:[%s211 + $0x8] sm:$0xf]
        %v220 = vld [vmem:[%s211 + $0xc] sm:$0xf]
        %v221 = vld [vmem:[%s211 + $0x10] sm:$0xf]
        %v222 = vld [vmem:[%s211 + $0x14] sm:$0xf]
        %v223 = vld [vmem:[%s211 + $0x18] sm:$0xf]
        %v224 = vld [vmem:[%s211 + $0x1c] sm:$0xf]
        %v225 = vld [vmem:[%s211 + $0x20] sm:$0xf]
        %v226 = vld [vmem:[%s180] sm:$0xff]
        %v227 = vld [vmem:[%s180 + $0x8] sm:$0xff]
        %v228 = vld [vmem:[%s180 + $0x10] sm:$0xff]
        %v229 = vld [vmem:[%s180 + $0x18] sm:$0xff]
        %v230 = vld [vmem:[%s180 + $0x20] sm:$0xff]
        %v231 = vld [vmem:[%s180 + $0x28] sm:$0xff]
        %v232 = vld [vmem:[%s180 + $0x30] sm:$0xff]
        %v233 = vld [vmem:[%s180 + $0x38] sm:$0xff]
        %v243 = vunpack.c.l.b16 %v217
        %v244 = vunpack.c.l.b16 %v218
        %v245 = vunpack.c.l.b16 %v219
        %v246 = vunpack.c.l.b16 %v220
        %v247 = vunpack.c.l.b16 %v221
        %v248 = vunpack.c.l.b16 %v222
        %v249 = vunpack.c.l.b16 %v223
        %v250 = vunpack.c.l.b16 %v224
        %v251 = vunpack.c.l.b16 %v225
        %v252 = vpack.c.b16 %v244, %v243
        %v253 = vpack.c.b16 %v246, %v245
        %v254 = vpack.c.b16 %v248, %v247
        %v255 = vpack.c.b16 %v250, %v249
        %v256 = vpack.c.b16 %v251, %v251
        %v265 = vunpack.c.l.b16 %v226
        %v266 = vunpack.c.h.b16 %v226
        %v267 = vunpack.c.l.b16 %v227
        %v268 = vunpack.c.h.b16 %v227
        %v269 = vunpack.c.l.b16 %v228
        %v270 = vunpack.c.h.b16 %v228
        %v271 = vunpack.c.l.b16 %v229
        %v272 = vunpack.c.h.b16 %v229
        %v273 = vunpack.c.l.b16 %v230
        %v274 = vunpack.c.h.b16 %v230
        %v275 = vunpack.c.l.b16 %v231
        %v276 = vunpack.c.h.b16 %v231
        %v277 = vunpack.c.l.b16 %v232
        %v278 = vunpack.c.h.b16 %v232
        %v279 = vunpack.c.l.b16 %v233
        %v280 = vunpack.c.h.b16 %v233
        %v281 = vpack.c.b16 %v267, %v265
        %v282 = vpack.c.b16 %v268, %v266
        %v283 = vpack.c.b16 %v271, %v269
        %v284 = vpack.c.b16 %v272, %v270
        %v285 = vpack.c.b16 %v275, %v273
        %v286 = vpack.c.b16 %v276, %v274
        %v287 = vpack.c.b16 %v279, %v277
        %v288 = vpack.c.b16 %v280, %v278
        %vm297 = vcmask 523264
        %v299 = vsel %vm297, %v252, 0
        %v302 = vsel %vm297, %v253, 0
        %v305 = vsel %vm297, %v254, 0
        %v308 = vsel %vm297, %v255, 0
        %v311 = vsel %vm297, %v256, 0
        %313 = vmatpush.bf16.msra.mxu0 0
        %314 = vmatpush.bf16.msra.mxu0 0
        %315 = vmatpush.bf16.msra.mxu0 0
        %316 = vmatpush.bf16.msra.mxu0 0
        %317 = vmatpush.bf16.msra.mxu0 %v287
        %318 = vmatpush.bf16.msra.mxu0 %v285
        %319 = vmatpush.bf16.msra.mxu0 %v283
        %320 = vmatpush.bf16.msra.mxu0 %v281
        %321 = vmatmul.bf16.gmra.mxu0 %v299
        %v322 = vpop.f32.mrf.mxu0
        %v323 = vadd.f32 0.0, %v322
        %v324 = vpop.f32.mrf.mxu0
        %v325 = vadd.f32 0.0, %v324
        %326 = vmatmul.bf16.gmra.mxu0 %v302
        %v327 = vpop.f32.mrf.mxu0
        %v328 = vadd.f32 0.0, %v327
        %v329 = vpop.f32.mrf.mxu0
        %v330 = vadd.f32 0.0, %v329
        %331 = vmatmul.bf16.gmra.mxu0 %v305
        %v332 = vpop.f32.mrf.mxu0
        %v333 = vadd.f32 0.0, %v332
        %v334 = vpop.f32.mrf.mxu0
        %v335 = vadd.f32 0.0, %v334
        %336 = vmatmul.bf16.gmra.mxu0 %v308
        %v337 = vpop.f32.mrf.mxu0
        %v338 = vadd.f32 0.0, %v337
        %v339 = vpop.f32.mrf.mxu0
        %v340 = vadd.f32 0.0, %v339
        %341 = vmatmul.bf16.gmra.mxu0 %v311
        %v342 = vpop.f32.mrf.mxu0
        %v343 = vadd.f32 0.0, %v342
        %v344 = vpop.f32.mrf.mxu0
        %345 = vdwg.mxu0
        %346 = vmatpush.bf16.msra.mxu0 0
        %347 = vmatpush.bf16.msra.mxu0 0
        %348 = vmatpush.bf16.msra.mxu0 0
        %349 = vmatpush.bf16.msra.mxu0 0
        %350 = vmatpush.bf16.msra.mxu0 %v288
        %351 = vmatpush.bf16.msra.mxu0 %v286
        %352 = vmatpush.bf16.msra.mxu0 %v284
        %353 = vmatpush.bf16.msra.mxu0 %v282
        %354 = vmatmul.bf16.gmra.mxu0 %v299
        %v355 = vpop.f32.mrf.mxu0
        %v356 = vadd.f32 0.0, %v355
        %v357 = vpop.f32.mrf.mxu0
        %v358 = vadd.f32 0.0, %v357
        %359 = vmatmul.bf16.gmra.mxu0 %v302
        %v360 = vpop.f32.mrf.mxu0
        %v361 = vadd.f32 0.0, %v360
        %v362 = vpop.f32.mrf.mxu0
        %v363 = vadd.f32 0.0, %v362
        %364 = vmatmul.bf16.gmra.mxu0 %v305
        %v365 = vpop.f32.mrf.mxu0
        %v366 = vadd.f32 0.0, %v365
        %v367 = vpop.f32.mrf.mxu0
        %v368 = vadd.f32 0.0, %v367
        %369 = vmatmul.bf16.gmra.mxu0 %v308
        %v370 = vpop.f32.mrf.mxu0
        %v371 = vadd.f32 0.0, %v370
        %v372 = vpop.f32.mrf.mxu0
        %v373 = vadd.f32 0.0, %v372
        %374 = vmatmul.bf16.gmra.mxu0 %v311
        %v375 = vpop.f32.mrf.mxu0
        %v376 = vadd.f32 0.0, %v375
        %v377 = vpop.f32.mrf.mxu0
        %378 = vdwg.mxu0
        %379 = vst [vmem:[%s206] sm:$0xff] %v323
        %380 = vst [vmem:[%s206 + $0x8] sm:$0xff] %v356
        %381 = vst [vmem:[%s206 + $0x10] sm:$0xff] %v325
        %382 = vst [vmem:[%s206 + $0x18] sm:$0xff] %v358
        %383 = vst [vmem:[%s206 + $0x20] sm:$0xff] %v328
        %384 = vst [vmem:[%s206 + $0x28] sm:$0xff] %v361
        %385 = vst [vmem:[%s206 + $0x30] sm:$0xff] %v330
        %386 = vst [vmem:[%s206 + $0x38] sm:$0xff] %v363
        %387 = vst [vmem:[%s206 + $0x40] sm:$0xff] %v333
        %388 = vst [vmem:[%s206 + $0x48] sm:$0xff] %v366
        %389 = vst [vmem:[%s206 + $0x50] sm:$0xff] %v335
        %390 = vst [vmem:[%s206 + $0x58] sm:$0xff] %v368
        %391 = vst [vmem:[%s206 + $0x60] sm:$0xff] %v338
        %392 = vst [vmem:[%s206 + $0x68] sm:$0xff] %v371
        %393 = vst [vmem:[%s206 + $0x70] sm:$0xff] %v340
        %394 = vst [vmem:[%s206 + $0x78] sm:$0xff] %v373
        %395 = vst [vmem:[%s206 + $0x80] sm:$0xff] %v343
        %396 = vst [vmem:[%s206 + $0x88] sm:$0xff] %v376
        %s397 = sand.u32 %s104, 1
        %s398 = scalar_lea.sflag [#allocation4], %s397
        %s399 = sand.u32 %s104, 1
        %s400 = smul.addr %s399, 144
        %s401 = scalar_lea.vmem [#allocation5], %s400
        // Predicated region
        $region33: #{tpu_custom_call.1} parent=27 // pred_check
          %p402 = pneg %p114
        $region34: #{tpu_custom_call.1} parent=27 // pred_check_branch
          %404 = sbr.rel (%p402) target = $region36
        $region35: #{tpu_custom_call.1} parent=27 // pred_region
          %s405 = smul.u32 9, %s24
          %s406 = smul.u32 2, %s25
          %408 = vsyncadd %s398, 0
          %s409 = smul.addr %s405, 2
          %s410 = sadd.s32 %s406, %s409
          %s411 = smul.addr %s26, 18
          %s412 = sadd.s32 %s410, %s411
          %s413 = smul.addr %s412, 8
          %s414 = scalar_lea.hbm %s2, %s413
          %s415 = sshll.u32 %s401, 4
          %s416 = int_to_ptr.vmem [resolvable:$true] %s415
          %s417 = sshll.u32 %s414, 4
          %s418 = int_to_ptr.hbm [resolvable:$true] %s417
          %423 = dma.vmem_to_hbm [thread:$0]  %s416, 2304, %s418, %s398, 256, 256, 16
        $region36: #{tpu_custom_call.1} parent=27 // pred_fallthru
          _
      $region28: #{tpu_custom_call.1} parent=5 // pred_fallthru
        _
      %p424 = scmp.le.s32.totalorder 2, %s14
      // Predicated region
      $region37: #{tpu_custom_call.1} parent=5 // pred_check
        %p425 = pneg %p424
      $region38: #{tpu_custom_call.1} parent=5 // pred_check_branch
        %427 = sbr.rel (%p425) target = $region40
      $region39: #{tpu_custom_call.1} parent=5 // pred_region
        %s428 = ssub.s32 %s14, 2
        // Predicated region
        $region41: #{tpu_custom_call.1} parent=39 // pred_check
          %p429 = pneg %p120
        $region42: #{tpu_custom_call.1} parent=39 // pred_check_branch
          %431 = sbr.rel (%p429) target = $region44
        $region43: #{tpu_custom_call.1} parent=39 // pred_region
          %s432 = sand.u32 %s105, 1
          %s433 = scalar_lea.sflag [#allocation4], %s432
          %s434 = sand.u32 %s105, 1
          %s435 = smul.addr %s434, 144
          %s436 = scalar_lea.vmem [#allocation5], %s435
          %438 = dma.done %s433, 2304
        $region44: #{tpu_custom_call.1} parent=39 // pred_fallthru
          _
      $region40: #{tpu_custom_call.1} parent=5 // pred_fallthru
        _
    $region6: #{tpu_custom_call.1} parent=1 // loop_footer
      %s18 = sadd.s32 1, %s14
    $region7: #{tpu_custom_call.1} parent=1 // loop_footer_branch
      %13 = sbr.rel target = $region3
    $region8: #{tpu_custom_call.1} parent=1 // loop_exit
      _
    %439 = vsyncpa [#allocation3], 1
    %s440 = scalar_lea.sflag [#allocation3], 1
    %441 = vsyncpa %s440, 1
    %442 = vsyncpa [#allocation4], 1
    %s443 = scalar_lea.sflag [#allocation4], 1
    %444 = vsyncpa %s443, 1

</llo_original>
